<compile_context>
chip_gen: v5e
topology: v5e:2x2
jax: 0.10.0
libtpu: 0.0.40
codegen_flags: <defaults>
</compile_context>

<pallas_src>
import functools

import jax
import jax.numpy as jnp
from jax import lax
from jax.experimental import pallas as pl
from jax.experimental.pallas import tpu as pltpu


# Conservative limit so tiles stay inside v7x's scoped VMEM; raise for v5e/v6e if desired.
_COMPILER_PARAMS = pltpu.CompilerParams(
    dimension_semantics=("parallel",),
    vmem_limit_bytes=32 * 1024 * 1024,
)

# Max rows per tile. 128 keeps (tile + double buffers) tiny and exercises multi-step grids
# at the demo shapes; production would sweep this upward toward the VMEM budget.
_MAX_TILE_ROWS = 128


def _pick_row_tile(m, max_rows=_MAX_TILE_ROWS):
    """Largest row tile <= max_rows that evenly divides m (multiple of 8), else full m."""
    if m <= max_rows:
        return m
    start = max_rows - (max_rows % 8)
    for t in range(start, 7, -8):
        if m % t == 0:
            return t
    return m  # fall back to a single block


def _maybe_bf16(x, bf16):
    return x.astype(jnp.bfloat16) if bf16 else x


# ---------------------------------------------------------------------------
# Kernels
# ---------------------------------------------------------------------------

def _gene_kv_kernel(gf_ref, wg_ref, bg_ref, wk_ref, bk_ref, wv_ref, bv_ref,
                    gt_ref, k_ref, v_ref, *, bf16):
    # gene_t = relu(gene_features @ Wg + bg); K = gene_t @ Wk + bk; V = gene_t @ Wv + bv
    x = _maybe_bf16(gf_ref[...], bf16)
    wg = _maybe_bf16(wg_ref[...], bf16)
    gt = jnp.dot(x, wg, preferred_element_type=jnp.float32) + bg_ref[...]
    gt = jnp.maximum(gt, 0.0)
    gt_ref[...] = gt

    gtb = _maybe_bf16(gt, bf16)
    wk = _maybe_bf16(wk_ref[...], bf16)
    wv = _maybe_bf16(wv_ref[...], bf16)
    k_ref[...] = jnp.dot(gtb, wk, preferred_element_type=jnp.float32) + bk_ref[...]
    v_ref[...] = jnp.dot(gtb, wv, preferred_element_type=jnp.float32) + bv_ref[...]


def _cell_attn_combine_kernel(cf_ref, wc_ref, bc_ref, wq_ref, bq_ref,
                              k_ref, v_ref, w1_ref, w2_ref, bcomb_ref,
                              comb_ref, attn_ref, *, scale, bf16):
    # cell_t = relu(cell @ Wc + bc)
    x = _maybe_bf16(cf_ref[...], bf16)
    wc = _maybe_bf16(wc_ref[...], bf16)
    ct = jnp.dot(x, wc, preferred_element_type=jnp.float32) + bc_ref[...]
    ct = jnp.maximum(ct, 0.0)
    ctb = _maybe_bf16(ct, bf16)

    # Q projection; scale applied on q ([tc, attn_dim]) instead of scores ([tc, Ng]).
    wq = _maybe_bf16(wq_ref[...], bf16)
    q = jnp.dot(ctb, wq, preferred_element_type=jnp.float32) + bq_ref[...]
    q = q * scale

    # Scores: contract the last axes directly -- no explicit k.T through the XLU.
    qm = _maybe_bf16(q, bf16)
    km = _maybe_bf16(k_ref[...], bf16)
    s = lax.dot_general(qm, km, dimension_numbers=(((1,), (1,)), ((), ())),
                        preferred_element_type=jnp.float32)

    # Numerically stable softmax; denominator reciprocal on the EUP.
    s_max = jnp.max(s, axis=-1, keepdims=True)
    p = jnp.exp(s - s_max)
    p = p * pl.reciprocal(jnp.sum(p, axis=-1, keepdims=True), approx=True)
    attn_ref[...] = p

    # attn_output = p @ V  (stays in VMEM, feeds combine directly)
    pm = _maybe_bf16(p, bf16)
    vm = _maybe_bf16(v_ref[...], bf16)
    ao = jnp.dot(pm, vm, preferred_element_type=jnp.float32)

    # relu(concat([cell_t, attn_out], axis=1) @ W_comb + b) without materializing the concat:
    # W_comb split into top/bottom halves in the wrapper.
    w1 = _maybe_bf16(w1_ref[...], bf16)
    w2 = _maybe_bf16(w2_ref[...], bf16)
    acc = jnp.dot(ctb, w1, preferred_element_type=jnp.float32)
    acc = acc + jnp.dot(_maybe_bf16(ao, bf16), w2, preferred_element_type=jnp.float32)
    acc = acc + bcomb_ref[...]
    comb_ref[...] = jnp.maximum(acc, 0.0)


def _mp_output_kernel(ag_ref, ac_ref, gene_ref, comb_ref, wo_ref, bo_ref, o_ref, *, bf16):
    # Message passing restricted to cell rows, fused with the output projection:
    # scores = (A[Ng:, :Ng] @ gene_t + A[Ng:, Ng:] @ combined_cell) @ Wo + bo
    ag = _maybe_bf16(ag_ref[...], bf16)
    ac = _maybe_bf16(ac_ref[...], bf16)
    g = _maybe_bf16(gene_ref[...], bf16)
    c = _maybe_bf16(comb_ref[...], bf16)
    m = jnp.dot(ag, g, preferred_element_type=jnp.float32)
    m = m + jnp.dot(ac, c, preferred_element_type=jnp.float32)
    wo = _maybe_bf16(wo_ref[...], bf16)
    mm = _maybe_bf16(m, bf16)
    o_ref[...] = jnp.dot(mm, wo, preferred_element_type=jnp.float32) + bo_ref[...]


# ---------------------------------------------------------------------------
# Wrappers (pallas_call with row-tiled grids)
# ---------------------------------------------------------------------------

def gene_kv(gene_features, wg, bg, wk, bk, wv, bv, *, bf16=False):
    ng, gf = gene_features.shape
    h = wg.shape[1]
    kd = wk.shape[1]
    tg = _pick_row_tile(ng)
    return pl.pallas_call(
        functools.partial(_gene_kv_kernel, bf16=bf16),
        out_shape=(
            jax.ShapeDtypeStruct((ng, h), jnp.float32),    # gene_t
            jax.ShapeDtypeStruct((ng, kd), jnp.float32),   # K
            jax.ShapeDtypeStruct((ng, h), jnp.float32),    # V
        ),
        grid=(ng // tg,),
        in_specs=[
            pl.BlockSpec((tg, gf), lambda i: (i, 0)),
            pl.BlockSpec((gf, h), lambda i: (0, 0)),
            pl.BlockSpec((1, h), lambda i: (0, 0)),
            pl.BlockSpec((h, kd), lambda i: (0, 0)),
            pl.BlockSpec((1, kd), lambda i: (0, 0)),
            pl.BlockSpec((h, h), lambda i: (0, 0)),
            pl.BlockSpec((1, h), lambda i: (0, 0)),
        ],
        out_specs=(
            pl.BlockSpec((tg, h), lambda i: (i, 0)),
            pl.BlockSpec((tg, kd), lambda i: (i, 0)),
            pl.BlockSpec((tg, h), lambda i: (i, 0)),
        ),
        compiler_params=_COMPILER_PARAMS,
    )(gene_features, wg, bg, wk, bk, wv, bv)


def cell_attn_combine(cell_features, k, v, params, attn_dim, *, bf16=False):
    nc, cf = cell_features.shape
    ng, kd = k.shape
    h = v.shape[1]
    tc = _pick_row_tile(nc)
    scale = 1.0 / (attn_dim ** 0.5)
    w1 = params["w_comb"][:h]    # top half multiplies cell_t
    w2 = params["w_comb"][h:]    # bottom half multiplies attn_out
    comb, attn = pl.pallas_call(
        functools.partial(_cell_attn_combine_kernel, scale=scale, bf16=bf16),
        out_shape=(
            jax.ShapeDtypeStruct((nc, h), jnp.float32),    # combined_cell_features
            jax.ShapeDtypeStruct((nc, ng), jnp.float32),   # attn_weights (module returns it)
        ),
        grid=(nc // tc,),
        in_specs=[
            pl.BlockSpec((tc, cf), lambda i: (i, 0)),      # cell_features tile
            pl.BlockSpec((cf, h), lambda i: (0, 0)),       # W_cell
            pl.BlockSpec((1, h), lambda i: (0, 0)),        # b_cell
            pl.BlockSpec((h, kd), lambda i: (0, 0)),       # Wq
            pl.BlockSpec((1, kd), lambda i: (0, 0)),       # bq
            pl.BlockSpec((ng, kd), lambda i: (0, 0)),      # K (precomputed, full)
            pl.BlockSpec((ng, h), lambda i: (0, 0)),       # V (precomputed, full)
            pl.BlockSpec((h, h), lambda i: (0, 0)),        # W_comb top
            pl.BlockSpec((h, h), lambda i: (0, 0)),        # W_comb bottom
            pl.BlockSpec((1, h), lambda i: (0, 0)),        # b_comb
        ],
        out_specs=(
            pl.BlockSpec((tc, h), lambda i: (i, 0)),
            pl.BlockSpec((tc, ng), lambda i: (i, 0)),
        ),
        compiler_params=_COMPILER_PARAMS,
    )(cell_features, params["w_cell"], params["b_cell"], params["wq"], params["bq"],
      k, v, w1, w2, params["b_comb"])
    return comb, attn


def mp_output(a_cg, a_cc, gene_t, comb, w_out, b_out, *, bf16=False):
    nc, ng = a_cg.shape
    h = gene_t.shape[1]
    od = w_out.shape[1]
    tc = _pick_row_tile(nc)
    return pl.pallas_call(
        functools.partial(_mp_output_kernel, bf16=bf16),
        out_shape=jax.ShapeDtypeStruct((nc, od), jnp.float32),
        grid=(nc // tc,),
        in_specs=[
            pl.BlockSpec((tc, ng), lambda i: (i, 0)),
            pl.BlockSpec((tc, nc), lambda i: (i, 0)),
            pl.BlockSpec((ng, h), lambda i: (0, 0)),
            pl.BlockSpec((nc, h), lambda i: (0, 0)),
            pl.BlockSpec((h, od), lambda i: (0, 0)),
            pl.BlockSpec((1, od), lambda i: (0, 0)),
        ],
        out_specs=pl.BlockSpec((tc, od), lambda i: (i, 0)),
        compiler_params=_COMPILER_PARAMS,
    )(a_cg, a_cc, gene_t, comb, w_out, b_out)


def graph_transformer_forward(adjacency, gene_features, cell_features, params, attn_dim,
                              *, use_bf16=False):
    """Pallas forward pass matching GraphTransformer.forward (eval mode)."""
    ng = gene_features.shape[0]

    # Fused gene transform + K/V projections (one pass over gene_features).
    gene_t, k, v = gene_kv(gene_features, params["w_gene"], params["b_gene"],
                           params["wk"], params["bk"], params["wv"], params["bv"],
                           bf16=use_bf16)

    # Fused cell transform + attention + combine, tiled over cell rows.
    comb, attn_w = cell_attn_combine(cell_features, k, v, params, attn_dim, bf16=use_bf16)

    # Only the last Nc rows of (A @ concat(gene_t, comb)) feed cell_output.
    a_cg = adjacency[ng:, :ng]
    a_cc = adjacency[ng:, ng:]
    scores = mp_output(a_cg, a_cc, gene_t, comb, params["w_out"], params["b_out"], bf16=use_bf16)
    return scores, attn_w


# ---------------------------------------------------------------------------
# Params + pure-JAX reference
# ---------------------------------------------------------------------------

def init_params(key, gene_feature_size, cell_feature_size, hidden_dim, output_dim, attn_dim):
    """Deterministic init mirroring nn.Linear (weights stored pre-transposed [in, out])."""
    ks = jax.random.split(key, 14)

    def lin(kw, kb, fan_in, fan_out):
        bound = 1.0 / (fan_in ** 0.5)
        w = jax.random.uniform(kw, (fan_in, fan_out), jnp.float32, -bound, bound)
        b = jax.random.uniform(kb, (1, fan_out), jnp.float32, -bound, bound)
        return w, b

    p = {}
    p["w_gene"], p["b_gene"] = lin(ks[0], ks[1], gene_feature_size, hidden_dim)
    p["w_cell"], p["b_cell"] = lin(ks[2], ks[3], cell_feature_size, hidden_dim)
    p["wq"], p["bq"] = lin(ks[4], ks[5], hidden_dim, attn_dim)
    p["wk"], p["bk"] = lin(ks[6], ks[7], hidden_dim, attn_dim)
    p["wv"], p["bv"] = lin(ks[8], ks[9], hidden_dim, hidden_dim)
    p["w_comb"], p["b_comb"] = lin(ks[10], ks[11], 2 * hidden_dim, hidden_dim)
    p["w_out"], p["b_out"] = lin(ks[12], ks[13], hidden_dim, output_dim)
    return p


def graph_transformer_ref(adjacency, gene_features, cell_features, params, attn_dim):
    """Pure-JAX reference, literal transcription of the PyTorch forward (eval mode)."""
    gt = jax.nn.relu(gene_features @ params["w_gene"] + params["b_gene"])
    ct = jax.nn.relu(cell_features @ params["w_cell"] + params["b_cell"])
    q = ct @ params["wq"] + params["bq"]
    k = gt @ params["wk"] + params["bk"]
    v = gt @ params["wv"] + params["bv"]
    s = (q @ k.T) * (1.0 / attn_dim ** 0.5)
    p = jax.nn.softmax(s, axis=-1)
    attn_out = p @ v
    comb = jnp.concatenate([ct, attn_out], axis=1)
    comb = jax.nn.relu(comb @ params["w_comb"] + params["b_comb"])
    allf = jnp.concatenate([gt, comb], axis=0)
    mp = adjacency @ allf
    nc = cell_features.shape[0]
    scores = mp[-nc:] @ params["w_out"] + params["b_out"]
    return scores, p


def _rel_err(a, b):
    return float(jnp.linalg.norm(a - b) / (jnp.linalg.norm(b) + 1e-12))


if __name__ == "__main__":
    # Small shapes, chosen lane-dense where it matters (hidden_dim = attn_dim = Ng = 128).
    gene_feature_size = 32
    cell_feature_size = 48
    hidden_dim = 128
    attn_dim = 128
    output_dim = 8
    Ng = 128   # gene tokens
    Nc = 256   # cell tokens (tiled into 128-row grid steps)

    key = jax.random.PRNGKey(0)
    k_params, k_gene, k_cell, k_adj = jax.random.split(key, 4)

    params = init_params(k_params, gene_feature_size, cell_feature_size,
                         hidden_dim, output_dim, attn_dim)
    gene_features = jax.random.normal(k_gene, (Ng, gene_feature_size), jnp.float32)
    cell_features = jax.random.normal(k_cell, (Nc, cell_feature_size), jnp.float32)
    adjacency = jax.random.uniform(k_adj, (Ng + Nc, Ng + Nc), jnp.float32)

    scores_ref, attn_ref = graph_transformer_ref(adjacency, gene_features, cell_features,
                                                 params, attn_dim)

    # f32 MXU operands (near-exact path; approx reciprocal on the softmax denominator).
    scores, attn_w = graph_transformer_forward(adjacency, gene_features, cell_features,
                                               params, attn_dim, use_bf16=False)
    scores = jax.block_until_ready(scores)
    attn_w = jax.block_until_ready(attn_w)
    assert _rel_err(attn_w, attn_ref) < 2e-2, "attn_weights mismatch (f32)"
    assert _rel_err(scores, scores_ref) < 2e-2, "cell_scores mismatch (f32)"

    # bf16 MXU operands with f32 accumulation (v6e/v7x fast path).
    scores16, attn16 = graph_transformer_forward(adjacency, gene_features, cell_features,
                                                 params, attn_dim, use_bf16=True)
    scores16 = jax.block_until_ready(scores16)
    attn16 = jax.block_until_ready(attn16)
    assert _rel_err(attn16, attn_ref) < 1e-1, "attn_weights mismatch (bf16)"
    assert _rel_err(scores16, scores_ref) < 1e-1, "cell_scores mismatch (bf16)"

    print("KERNEL_OK")
</pallas_src>

<mosaic_0001>
module attributes {stable_mosaic.version = 11 : i64} {
  func.func @_gene_kv_kernel(%arg0: i32, %arg1: memref<128x32xf32, #tpu.memory_space<vmem>>, %arg2: memref<32x128xf32, #tpu.memory_space<vmem>>, %arg3: memref<1x128xf32, #tpu.memory_space<vmem>>, %arg4: memref<128x128xf32, #tpu.memory_space<vmem>>, %arg5: memref<1x128xf32, #tpu.memory_space<vmem>>, %arg6: memref<128x128xf32, #tpu.memory_space<vmem>>, %arg7: memref<1x128xf32, #tpu.memory_space<vmem>>, %arg8: memref<128x128xf32, #tpu.memory_space<vmem>>, %arg9: memref<128x128xf32, #tpu.memory_space<vmem>>, %arg10: memref<128x128xf32, #tpu.memory_space<vmem>>) attributes {dimension_semantics = [#tpu.dimension_semantics<parallel>], iteration_bounds = array<i64: 1>, scalar_prefetch = 0 : i64, scratch_operands = 0 : i64, tpu.core_type = #tpu.core_type<tc>, window_params = [{transform_indices = @transform_0, window_bounds = array<i64: 128, 32>}, {pipeline_mode = #tpu.pipeline_mode<synchronous>, transform_indices = @transform_1, window_bounds = array<i64: 32, 128>}, {pipeline_mode = #tpu.pipeline_mode<synchronous>, transform_indices = @transform_2, window_bounds = array<i64: 1, 128>}, {pipeline_mode = #tpu.pipeline_mode<synchronous>, transform_indices = @transform_3, window_bounds = array<i64: 128, 128>}, {pipeline_mode = #tpu.pipeline_mode<synchronous>, transform_indices = @transform_4, window_bounds = array<i64: 1, 128>}, {pipeline_mode = #tpu.pipeline_mode<synchronous>, transform_indices = @transform_5, window_bounds = array<i64: 128, 128>}, {pipeline_mode = #tpu.pipeline_mode<synchronous>, transform_indices = @transform_6, window_bounds = array<i64: 1, 128>}, {transform_indices = @transform_7, window_bounds = array<i64: 128, 128>}, {transform_indices = @transform_8, window_bounds = array<i64: 128, 128>}, {transform_indices = @transform_9, window_bounds = array<i64: 128, 128>}]} {
    %c0 = arith.constant 0 : index
    %c0_0 = arith.constant 0 : index
    %0 = vector.load %arg1[%c0, %c0_0] : memref<128x32xf32, #tpu.memory_space<vmem>>, vector<128x32xf32>
    %c0_1 = arith.constant 0 : index
    %c0_2 = arith.constant 0 : index
    %1 = vector.load %arg2[%c0_1, %c0_2] : memref<32x128xf32, #tpu.memory_space<vmem>>, vector<32x128xf32>
    %cst = arith.constant dense<0.000000e+00> : vector<128x128xf32>
    %2 = tpu.matmul %0, %1, %cst {dimension_numbers = #tpu.dot_dimension_numbers<[1], [0], [0], [1], [0, 0, 1, 1], [], []>} : vector<128x32xf32>, vector<32x128xf32>, vector<128x128xf32> -> vector<128x128xf32>
    %c0_3 = arith.constant 0 : index
    %c0_4 = arith.constant 0 : index
    %3 = vector.load %arg3[%c0_3, %c0_4] : memref<1x128xf32, #tpu.memory_space<vmem>>, vector<1x128xf32>
    %4 = vector.broadcast %3 : vector<1x128xf32> to vector<128x128xf32>
    %5 = arith.addf %2, %4 : vector<128x128xf32>
    %cst_5 = arith.constant 0.000000e+00 : f32
    %6 = vector.broadcast %cst_5 : f32 to vector<128x128xf32>
    %7 = arith.maximumf %5, %6 : vector<128x128xf32>
    %c0_6 = arith.constant 0 : index
    %c0_7 = arith.constant 0 : index
    %8 = vector.load %arg8[%c0_6, %c0_7] : memref<128x128xf32, #tpu.memory_space<vmem>>, vector<128x128xf32>
    tpu.vector_store %arg8[%c0_6, %c0_7], %7 {strides = array<i32>} : memref<128x128xf32, #tpu.memory_space<vmem>>, vector<128x128xf32>,
    %c0_8 = arith.constant 0 : index
    %c0_9 = arith.constant 0 : index
    %9 = vector.load %arg4[%c0_8, %c0_9] : memref<128x128xf32, #tpu.memory_space<vmem>>, vector<128x128xf32>
    %c0_10 = arith.constant 0 : index
    %c0_11 = arith.constant 0 : index
    %10 = vector.load %arg6[%c0_10, %c0_11] : memref<128x128xf32, #tpu.memory_space<vmem>>, vector<128x128xf32>
    %cst_12 = arith.constant dense<0.000000e+00> : vector<128x128xf32>
    %11 = tpu.matmul %7, %9, %cst_12 {dimension_numbers = #tpu.dot_dimension_numbers<[1], [0], [0], [1], [0, 0, 1, 1], [], []>} : vector<128x128xf32>, vector<128x128xf32>, vector<128x128xf32> -> vector<128x128xf32>
    %c0_13 = arith.constant 0 : index
    %c0_14 = arith.constant 0 : index
    %12 = vector.load %arg5[%c0_13, %c0_14] : memref<1x128xf32, #tpu.memory_space<vmem>>, vector<1x128xf32>
    %13 = vector.broadcast %12 : vector<1x128xf32> to vector<128x128xf32>
    %14 = arith.addf %11, %13 : vector<128x128xf32>
    %c0_15 = arith.constant 0 : index
    %c0_16 = arith.constant 0 : index
    %15 = vector.load %arg9[%c0_15, %c0_16] : memref<128x128xf32, #tpu.memory_space<vmem>>, vector<128x128xf32>
    tpu.vector_store %arg9[%c0_15, %c0_16], %14 {strides = array<i32>} : memref<128x128xf32, #tpu.memory_space<vmem>>, vector<128x128xf32>,
    %cst_17 = arith.constant dense<0.000000e+00> : vector<128x128xf32>
    %16 = tpu.matmul %7, %10, %cst_17 {dimension_numbers = #tpu.dot_dimension_numbers<[1], [0], [0], [1], [0, 0, 1, 1], [], []>} : vector<128x128xf32>, vector<128x128xf32>, vector<128x128xf32> -> vector<128x128xf32>
    %c0_18 = arith.constant 0 : index
    %c0_19 = arith.constant 0 : index
    %17 = vector.load %arg7[%c0_18, %c0_19] : memref<1x128xf32, #tpu.memory_space<vmem>>, vector<1x128xf32>
    %18 = vector.broadcast %17 : vector<1x128xf32> to vector<128x128xf32>
    %19 = arith.addf %16, %18 : vector<128x128xf32>
    %c0_20 = arith.constant 0 : index
    %c0_21 = arith.constant 0 : index
    %20 = vector.load %arg10[%c0_20, %c0_21] : memref<128x128xf32, #tpu.memory_space<vmem>>, vector<128x128xf32>
    tpu.vector_store %arg10[%c0_20, %c0_21], %19 {strides = array<i32>} : memref<128x128xf32, #tpu.memory_space<vmem>>, vector<128x128xf32>,
    return
  }
  func.func @transform_0(%arg0: i32) -> (i32, i32) {
    %c0_i32 = arith.constant 0 : i32
    %c0_i32_0 = arith.constant 0 : i32
    return %arg0, %c0_i32 : i32, i32
  }
  func.func @transform_1(%arg0: i32) -> (i32, i32) {
    %c0_i32 = arith.constant 0 : i32
    %c0_i32_0 = arith.constant 0 : i32
    %c0_i32_1 = arith.constant 0 : i32
    return %c0_i32, %c0_i32_0 : i32, i32
  }
  func.func @transform_2(%arg0: i32) -> (i32, i32) {
    %c0_i32 = arith.constant 0 : i32
    %c0_i32_0 = arith.constant 0 : i32
    %c0_i32_1 = arith.constant 0 : i32
    return %c0_i32, %c0_i32_0 : i32, i32
  }
  func.func @transform_3(%arg0: i32) -> (i32, i32) {
    %c0_i32 = arith.constant 0 : i32
    %c0_i32_0 = arith.constant 0 : i32
    %c0_i32_1 = arith.constant 0 : i32
    return %c0_i32, %c0_i32_0 : i32, i32
  }
  func.func @transform_4(%arg0: i32) -> (i32, i32) {
    %c0_i32 = arith.constant 0 : i32
    %c0_i32_0 = arith.constant 0 : i32
    %c0_i32_1 = arith.constant 0 : i32
    return %c0_i32, %c0_i32_0 : i32, i32
  }
  func.func @transform_5(%arg0: i32) -> (i32, i32) {
    %c0_i32 = arith.constant 0 : i32
    %c0_i32_0 = arith.constant 0 : i32
    %c0_i32_1 = arith.constant 0 : i32
    return %c0_i32, %c0_i32_0 : i32, i32
  }
  func.func @transform_6(%arg0: i32) -> (i32, i32) {
    %c0_i32 = arith.constant 0 : i32
    %c0_i32_0 = arith.constant 0 : i32
    %c0_i32_1 = arith.constant 0 : i32
    return %c0_i32, %c0_i32_0 : i32, i32
  }
  func.func @transform_7(%arg0: i32) -> (i32, i32) {
    %c0_i32 = arith.constant 0 : i32
    %c0_i32_0 = arith.constant 0 : i32
    return %arg0, %c0_i32 : i32, i32
  }
  func.func @transform_8(%arg0: i32) -> (i32, i32) {
    %c0_i32 = arith.constant 0 : i32
    %c0_i32_0 = arith.constant 0 : i32
    return %arg0, %c0_i32 : i32, i32
  }
  func.func @transform_9(%arg0: i32) -> (i32, i32) {
    %c0_i32 = arith.constant 0 : i32
    %c0_i32_0 = arith.constant 0 : i32
    return %arg0, %c0_i32 : i32, i32
  }
}

</mosaic_0001>

<llo_original>
// kernel: tpu_custom_call.1
$region0: #{tpu_custom_call.1}
  #allocation0 [shape = 'u32[]', space=smem, size = 0x4, offset = 0x4, fixed_abs, tag = 'smem constant byte address 0x4 - core index']
  #allocation1 [shape = 'u32[72,128]{1,0:T(1,128)}', space=vmem, size = 0x9000, scoped, tag = 'internal scratch']
  %s0 = inlined_call_operand.vmem [shape: f32[128,32], index: 0, kind: input, shape index: {}]
  %s1 = inlined_call_operand.vmem [shape: f32[32,128], index: 1, kind: input, shape index: {}]
  %s2 = inlined_call_operand.vmem [shape: f32[1,128], index: 2, kind: input, shape index: {}]
  %s3 = inlined_call_operand.vmem [shape: f32[128,128], index: 3, kind: input, shape index: {}]
  %s4 = inlined_call_operand.vmem [shape: f32[1,128], index: 4, kind: input, shape index: {}]
  %s5 = inlined_call_operand.hbm [shape: f32[128,128], index: 5, kind: input, shape index: {}]
  %s6 = inlined_call_operand.vmem [shape: f32[1,128], index: 6, kind: input, shape index: {}]
  %s7 = inlined_call_operand.hbm [shape: f32[128,128], index: 7, kind: output, shape index: {0}]
  %s8 = inlined_call_operand.hbm [shape: f32[128,128], index: 8, kind: output, shape index: {1}]
  %s9 = inlined_call_operand.hbm [shape: f32[128,128], index: 9, kind: output, shape index: {2}]
  %10 = xla_tuple %s7, %s8, %s9
  %s11 = sld [smem:[#allocation0]]
  $region58: #{tpu_custom_call.1} parent=0
    _
  %s13 = ssub.s32 1, %s11
  %s14 = scalar_select 0, %s13, %s11
  $region1: #{tpu_custom_call.1} parent=0
    #allocation2 [shape = 'u8[65536]{0}', space=vmem, size = 0x10000, scoped, tag = 'input window, operand 5, single buffered']
    #allocation3 [shape = 's32[1]{0}', space=sflag, size = 0x4, scoped, tag = 'scoped memory for tpu_custom_call.1']
    #allocation4 [shape = 's32[1]{0}', space=sflag, size = 0x4, scoped, tag = 'scoped memory for tpu_custom_call.1']
    #allocation5 [shape = 'u8[65536]{0}', space=vmem, size = 0x10000, scoped, tag = 'output window, operand 0, single buffered']
    #allocation6 [shape = 'u8[65536]{0}', space=vmem, size = 0x10000, scoped, tag = 'output window, operand 1, single buffered']
    #allocation7 [shape = 's32[1]{0}', space=sflag, size = 0x4, scoped, tag = 'scoped memory for tpu_custom_call.1']
    #allocation8 [shape = 'u8[65536]{0}', space=vmem, size = 0x10000, scoped, tag = 'output window, operand 2, single buffered']
    %15 = vsyncpa [#allocation3], 0
    %16 = vsyncpa [#allocation4], 0
    %17 = vsyncpa [#allocation7], 0
    // Predicated region
    $region2: #{tpu_custom_call.1} parent=1 // pred_check
      _
    $region3: #{tpu_custom_call.1} parent=1 // pred_check_branch
      %19 = sbr.rel (0) target = $region5
    $region4: #{tpu_custom_call.1} parent=1 // pred_region
      _
    $region5: #{tpu_custom_call.1} parent=1 // pred_fallthru
      _
    // Predicated region
    $region6: #{tpu_custom_call.1} parent=1 // pred_check
      _
    $region7: #{tpu_custom_call.1} parent=1 // pred_check_branch
      %21 = sbr.rel (0) target = $region9
    $region8: #{tpu_custom_call.1} parent=1 // pred_region
      _
    $region9: #{tpu_custom_call.1} parent=1 // pred_fallthru
      _
    // Predicated region
    $region10: #{tpu_custom_call.1} parent=1 // pred_check
      _
    $region11: #{tpu_custom_call.1} parent=1 // pred_check_branch
      %23 = sbr.rel (0) target = $region13
    $region12: #{tpu_custom_call.1} parent=1 // pred_region
      _
    $region13: #{tpu_custom_call.1} parent=1 // pred_fallthru
      _
    // Predicated region
    $region14: #{tpu_custom_call.1} parent=1 // pred_check
      _
    $region15: #{tpu_custom_call.1} parent=1 // pred_check_branch
      %25 = sbr.rel (0) target = $region17
    $region16: #{tpu_custom_call.1} parent=1 // pred_region
      _
    $region17: #{tpu_custom_call.1} parent=1 // pred_fallthru
      _
    // Predicated region
    $region18: #{tpu_custom_call.1} parent=1 // pred_check
      _
    $region19: #{tpu_custom_call.1} parent=1 // pred_check_branch
      %27 = sbr.rel (0) target = $region21
    $region20: #{tpu_custom_call.1} parent=1 // pred_region
      _
    $region21: #{tpu_custom_call.1} parent=1 // pred_fallthru
      _
    // Predicated region
    $region22: #{tpu_custom_call.1} parent=1 // pred_check
      _
    $region23: #{tpu_custom_call.1} parent=1 // pred_check_branch
      %29 = sbr.rel (0) target = $region25
    $region24: #{tpu_custom_call.1} parent=1 // pred_region
      %31 = vsyncadd [#allocation3], 0
      %s32 = sshll.u32 %s5, 4
      %s33 = int_to_ptr.hbm [resolvable:$true] %s32
      %s34 = sshll.u32 [#allocation2], 4
      %s35 = int_to_ptr.vmem [resolvable:$true] %s34
      %40 = dma.hbm_to_vmem [thread:$0]  %s33, 2048, %s35, [#allocation3], 128, 128, 8
    $region25: #{tpu_custom_call.1} parent=1 // pred_fallthru
      _
    // Predicated region
    $region26: #{tpu_custom_call.1} parent=1 // pred_check
      _
    $region27: #{tpu_custom_call.1} parent=1 // pred_check_branch
      %42 = sbr.rel (0) target = $region29
    $region28: #{tpu_custom_call.1} parent=1 // pred_region
      _
    $region29: #{tpu_custom_call.1} parent=1 // pred_fallthru
      _
    // Predicated region
    $region30: #{tpu_custom_call.1} parent=1 // pred_check
      _
    $region31: #{tpu_custom_call.1} parent=1 // pred_check_branch
      %44 = sbr.rel (0) target = $region33
    $region32: #{tpu_custom_call.1} parent=1 // pred_region
      %46 = dma.done [#allocation3], 2048
    $region33: #{tpu_custom_call.1} parent=1 // pred_fallthru
      _
    %v47 = vld [vmem:[%s0] sm:$0xff]
    %v48 = vld [vmem:[%s0 + $0x8] sm:$0xff]
    %v49 = vld [vmem:[%s0 + $0x10] sm:$0xff]
    %v50 = vld [vmem:[%s0 + $0x18] sm:$0xff]
    %v51 = vld [vmem:[%s0 + $0x20] sm:$0xff]
    %v52 = vld [vmem:[%s0 + $0x28] sm:$0xff]
    %v53 = vld [vmem:[%s0 + $0x30] sm:$0xff]
    %v54 = vld [vmem:[%s0 + $0x38] sm:$0xff]
    %v55 = vld [vmem:[%s0 + $0x40] sm:$0xff]
    %v56 = vld [vmem:[%s0 + $0x48] sm:$0xff]
    %v57 = vld [vmem:[%s0 + $0x50] sm:$0xff]
    %v58 = vld [vmem:[%s0 + $0x58] sm:$0xff]
    %v59 = vld [vmem:[%s0 + $0x60] sm:$0xff]
    %v60 = vld [vmem:[%s0 + $0x68] sm:$0xff]
    %v61 = vld [vmem:[%s0 + $0x70] sm:$0xff]
    %v62 = vld [vmem:[%s0 + $0x78] sm:$0xff]
    %v63 = vld [vmem:[%s1] sm:$0xff]
    %v64 = vld [vmem:[%s1 + $0x8] sm:$0xff]
    %v65 = vld [vmem:[%s1 + $0x10] sm:$0xff]
    %v66 = vld [vmem:[%s1 + $0x18] sm:$0xff]
    %v67 = vld [vmem:[%s2] sm:$0x1]
    %v69 = vperm.slane %v67, 0
    %vm71 = vcmask 261120
    %v73 = vsel %vm71, %v47, 0
    %v76 = vsel %vm71, %v48, 0
    %v79 = vsel %vm71, %v49, 0
    %v82 = vsel %vm71, %v50, 0
    %v85 = vsel %vm71, %v51, 0
    %v88 = vsel %vm71, %v52, 0
    %v91 = vsel %vm71, %v53, 0
    %v94 = vsel %vm71, %v54, 0
    %v97 = vsel %vm71, %v55, 0
    %v100 = vsel %vm71, %v56, 0
    %v103 = vsel %vm71, %v57, 0
    %v106 = vsel %vm71, %v58, 0
    %v109 = vsel %vm71, %v59, 0
    %v112 = vsel %vm71, %v60, 0
    %v115 = vsel %vm71, %v61, 0
    %v118 = vsel %vm71, %v62, 0
    %120 = vmatpush.msra.mxu0 0.0
    %121 = vmatpush.msra.mxu0 0.0
    %122 = vmatpush.msra.mxu0 0.0
    %123 = vmatpush.msra.mxu0 0.0
    %124 = vmatpush.msra.mxu0 0.0
    %125 = vmatpush.msra.mxu0 0.0
    %126 = vmatpush.msra.mxu0 0.0
    %127 = vmatpush.msra.mxu0 0.0
    %128 = vmatpush.msra.mxu0 0.0
    %129 = vmatpush.msra.mxu0 0.0
    %130 = vmatpush.msra.mxu0 0.0
    %131 = vmatpush.msra.mxu0 0.0
    %132 = vmatpush.msra.mxu0 %v66
    %133 = vmatpush.msra.mxu0 %v65
    %134 = vmatpush.msra.mxu0 %v64
    %135 = vmatpush.msra.mxu0 %v63
    %136 = vmatmul.f32.gmra.mxu0 %v73
    %v137 = vpop.f32.mrf.mxu0
    %v138 = vadd.f32 %v69, %v137
    %139 = vmatmul.f32.gmra.mxu0 %v76
    %v140 = vpop.f32.mrf.mxu0
    %v141 = vadd.f32 %v69, %v140
    %142 = vmatmul.f32.gmra.mxu0 %v79
    %v143 = vpop.f32.mrf.mxu0
    %v144 = vadd.f32 %v69, %v143
    %145 = vmatmul.f32.gmra.mxu0 %v82
    %v146 = vpop.f32.mrf.mxu0
    %v147 = vadd.f32 %v69, %v146
    %148 = vmatmul.f32.gmra.mxu0 %v85
    %v149 = vpop.f32.mrf.mxu0
    %v150 = vadd.f32 %v69, %v149
    %151 = vmatmul.f32.gmra.mxu0 %v88
    %v152 = vpop.f32.mrf.mxu0
    %v153 = vadd.f32 %v69, %v152
    %154 = vmatmul.f32.gmra.mxu0 %v91
    %v155 = vpop.f32.mrf.mxu0
    %v156 = vadd.f32 %v69, %v155
    %157 = vmatmul.f32.gmra.mxu0 %v94
    %v158 = vpop.f32.mrf.mxu0
    %v159 = vadd.f32 %v69, %v158
    %160 = vmatmul.f32.gmra.mxu0 %v97
    %v161 = vpop.f32.mrf.mxu0
    %v162 = vadd.f32 %v69, %v161
    %163 = vmatmul.f32.gmra.mxu0 %v100
    %v164 = vpop.f32.mrf.mxu0
    %v165 = vadd.f32 %v69, %v164
    %166 = vmatmul.f32.gmra.mxu0 %v103
    %v167 = vpop.f32.mrf.mxu0
    %v168 = vadd.f32 %v69, %v167
    %169 = vmatmul.f32.gmra.mxu0 %v106
    %v170 = vpop.f32.mrf.mxu0
    %v171 = vadd.f32 %v69, %v170
    %172 = vmatmul.f32.gmra.mxu0 %v109
    %v173 = vpop.f32.mrf.mxu0
    %v174 = vadd.f32 %v69, %v173
    %175 = vmatmul.f32.gmra.mxu0 %v112
    %v176 = vpop.f32.mrf.mxu0
    %v177 = vadd.f32 %v69, %v176
    %178 = vmatmul.f32.gmra.mxu0 %v115
    %v179 = vpop.f32.mrf.mxu0
    %v180 = vadd.f32 %v69, %v179
    %181 = vmatmul.f32.gmra.mxu0 %v118
    %v182 = vpop.f32.mrf.mxu0
    %v183 = vadd.f32 %v69, %v182
    %184 = vdwg.mxu0
    %v185 = vmax.f32 %v138, 0.0
    %v186 = vmax.f32 %v141, 0.0
    %v187 = vmax.f32 %v144, 0.0
    %v188 = vmax.f32 %v147, 0.0
    %v189 = vmax.f32 %v150, 0.0
    %v190 = vmax.f32 %v153, 0.0
    %v191 = vmax.f32 %v156, 0.0
    %v192 = vmax.f32 %v159, 0.0
    %v193 = vmax.f32 %v162, 0.0
    %v194 = vmax.f32 %v165, 0.0
    %v195 = vmax.f32 %v168, 0.0
    %v196 = vmax.f32 %v171, 0.0
    %v197 = vmax.f32 %v174, 0.0
    %v198 = vmax.f32 %v177, 0.0
    %v199 = vmax.f32 %v180, 0.0
    %v200 = vmax.f32 %v183, 0.0
    %201 = vst [vmem:[#allocation5] sm:$0xff] %v185
    %202 = vst [vmem:[#allocation5 + $0x8] sm:$0xff] %v186
    %203 = vst [vmem:[#allocation5 + $0x10] sm:$0xff] %v187
    %204 = vst [vmem:[#allocation5 + $0x18] sm:$0xff] %v188
    %205 = vst [vmem:[#allocation5 + $0x20] sm:$0xff] %v189
    %206 = vst [vmem:[#allocation5 + $0x28] sm:$0xff] %v190
    %207 = vst [vmem:[#allocation5 + $0x30] sm:$0xff] %v191
    %208 = vst [vmem:[#allocation5 + $0x38] sm:$0xff] %v192
    %209 = vst [vmem:[#allocation5 + $0x40] sm:$0xff] %v193
    %210 = vst [vmem:[#allocation5 + $0x48] sm:$0xff] %v194
    %211 = vst [vmem:[#allocation5 + $0x50] sm:$0xff] %v195
    %212 = vst [vmem:[#allocation5 + $0x58] sm:$0xff] %v196
    %213 = vst [vmem:[#allocation5 + $0x60] sm:$0xff] %v197
    %214 = vst [vmem:[#allocation5 + $0x68] sm:$0xff] %v198
    %215 = vst [vmem:[#allocation5 + $0x70] sm:$0xff] %v199
    %216 = vst [vmem:[#allocation5 + $0x78] sm:$0xff] %v200
    %v217 = vld [vmem:[%s3] sm:$0xff]
    %v218 = vld [vmem:[%s3 + $0x8] sm:$0xff]
    %v219 = vld [vmem:[%s3 + $0x10] sm:$0xff]
    %v220 = vld [vmem:[%s3 + $0x18] sm:$0xff]
    %v221 = vld [vmem:[%s3 + $0x20] sm:$0xff]
    %v222 = vld [vmem:[%s3 + $0x28] sm:$0xff]
    %v223 = vld [vmem:[%s3 + $0x30] sm:$0xff]
    %v224 = vld [vmem:[%s3 + $0x38] sm:$0xff]
    %v225 = vld [vmem:[%s3 + $0x40] sm:$0xff]
    %v226 = vld [vmem:[%s3 + $0x48] sm:$0xff]
    %v227 = vld [vmem:[%s3 + $0x50] sm:$0xff]
    %v228 = vld [vmem:[%s3 + $0x58] sm:$0xff]
    %v229 = vld [vmem:[%s3 + $0x60] sm:$0xff]
    %v230 = vld [vmem:[%s3 + $0x68] sm:$0xff]
    %v231 = vld [vmem:[%s3 + $0x70] sm:$0xff]
    %v232 = vld [vmem:[%s3 + $0x78] sm:$0xff]
    %v233 = vld [vmem:[#allocation2] sm:$0xff]
    %v234 = vld [vmem:[#allocation2 + $0x8] sm:$0xff]
    %v235 = vld [vmem:[#allocation2 + $0x10] sm:$0xff]
    %v236 = vld [vmem:[#allocation2 + $0x18] sm:$0xff]
    %v237 = vld [vmem:[#allocation2 + $0x20] sm:$0xff]
    %v238 = vld [vmem:[#allocation2 + $0x28] sm:$0xff]
    %v239 = vld [vmem:[#allocation2 + $0x30] sm:$0xff]
    %v240 = vld [vmem:[#allocation2 + $0x38] sm:$0xff]
    %v241 = vld [vmem:[#allocation2 + $0x40] sm:$0xff]
    %v242 = vld [vmem:[#allocation2 + $0x48] sm:$0xff]
    %v243 = vld [vmem:[#allocation2 + $0x50] sm:$0xff]
    %v244 = vld [vmem:[#allocation2 + $0x58] sm:$0xff]
    %v245 = vld [vmem:[#allocation2 + $0x60] sm:$0xff]
    %v246 = vld [vmem:[#allocation2 + $0x68] sm:$0xff]
    %v247 = vld [vmem:[#allocation2 + $0x70] sm:$0xff]
    %v248 = vld [vmem:[#allocation2 + $0x78] sm:$0xff]
    %v249 = vld [vmem:[%s4] sm:$0x1]
    %v251 = vperm.slane %v249, 0
    %253 = vmatpush.msra.mxu0 %v232
    %254 = vmatpush.msra.mxu0 %v231
    %255 = vmatpush.msra.mxu0 %v230
    %256 = vmatpush.msra.mxu0 %v229
    %257 = vmatpush.msra.mxu0 %v228
    %258 = vmatpush.msra.mxu0 %v227
    %259 = vmatpush.msra.mxu0 %v226
    %260 = vmatpush.msra.mxu0 %v225
    %261 = vmatpush.msra.mxu0 %v224
    %262 = vmatpush.msra.mxu0 %v223
    %263 = vmatpush.msra.mxu0 %v222
    %264 = vmatpush.msra.mxu0 %v221
    %265 = vmatpush.msra.mxu0 %v220
    %266 = vmatpush.msra.mxu0 %v219
    %267 = vmatpush.msra.mxu0 %v218
    %268 = vmatpush.msra.mxu0 %v217
    %269 = vmatmul.f32.gmra.mxu0 %v185
    %v270 = vpop.f32.mrf.mxu0
    %v271 = vadd.f32 %v251, %v270
    %272 = vmatmul.f32.gmra.mxu0 %v186
    %v273 = vpop.f32.mrf.mxu0
    %v274 = vadd.f32 %v251, %v273
    %275 = vmatmul.f32.gmra.mxu0 %v187
    %v276 = vpop.f32.mrf.mxu0
    %v277 = vadd.f32 %v251, %v276
    %278 = vmatmul.f32.gmra.mxu0 %v188
    %v279 = vpop.f32.mrf.mxu0
    %v280 = vadd.f32 %v251, %v279
    %281 = vmatmul.f32.gmra.mxu0 %v189
    %v282 = vpop.f32.mrf.mxu0
    %v283 = vadd.f32 %v251, %v282
    %284 = vmatmul.f32.gmra.mxu0 %v190
    %v285 = vpop.f32.mrf.mxu0
    %v286 = vadd.f32 %v251, %v285
    %287 = vmatmul.f32.gmra.mxu0 %v191
    %v288 = vpop.f32.mrf.mxu0
    %v289 = vadd.f32 %v251, %v288
    %290 = vmatmul.f32.gmra.mxu0 %v192
    %v291 = vpop.f32.mrf.mxu0
    %v292 = vadd.f32 %v251, %v291
    %293 = vmatmul.f32.gmra.mxu0 %v193
    %v294 = vpop.f32.mrf.mxu0
    %v295 = vadd.f32 %v251, %v294
    %296 = vmatmul.f32.gmra.mxu0 %v194
    %v297 = vpop.f32.mrf.mxu0
    %v298 = vadd.f32 %v251, %v297
    %299 = vmatmul.f32.gmra.mxu0 %v195
    %v300 = vpop.f32.mrf.mxu0
    %v301 = vadd.f32 %v251, %v300
    %302 = vmatmul.f32.gmra.mxu0 %v196
    %v303 = vpop.f32.mrf.mxu0
    %v304 = vadd.f32 %v251, %v303
    %305 = vmatmul.f32.gmra.mxu0 %v197
    %v306 = vpop.f32.mrf.mxu0
    %v307 = vadd.f32 %v251, %v306
    %308 = vmatmul.f32.gmra.mxu0 %v198
    %v309 = vpop.f32.mrf.mxu0
    %v310 = vadd.f32 %v251, %v309
    %311 = vmatmul.f32.gmra.mxu0 %v199
    %v312 = vpop.f32.mrf.mxu0
    %v313 = vadd.f32 %v251, %v312
    %314 = vmatmul.f32.gmra.mxu0 %v200
    %v315 = vpop.f32.mrf.mxu0
    %v316 = vadd.f32 %v251, %v315
    %317 = vdwg.mxu0
    %318 = vst [vmem:[#allocation6] sm:$0xff] %v271
    %319 = vst [vmem:[#allocation6 + $0x8] sm:$0xff] %v274
    %320 = vst [vmem:[#allocation6 + $0x10] sm:$0xff] %v277
    %321 = vst [vmem:[#allocation6 + $0x18] sm:$0xff] %v280
    %322 = vst [vmem:[#allocation6 + $0x20] sm:$0xff] %v283
    %323 = vst [vmem:[#allocation6 + $0x28] sm:$0xff] %v286
    %324 = vst [vmem:[#allocation6 + $0x30] sm:$0xff] %v289
    %325 = vst [vmem:[#allocation6 + $0x38] sm:$0xff] %v292
    %326 = vst [vmem:[#allocation6 + $0x40] sm:$0xff] %v295
    %327 = vst [vmem:[#allocation6 + $0x48] sm:$0xff] %v298
    %328 = vst [vmem:[#allocation6 + $0x50] sm:$0xff] %v301
    %329 = vst [vmem:[#allocation6 + $0x58] sm:$0xff] %v304
    %330 = vst [vmem:[#allocation6 + $0x60] sm:$0xff] %v307
    %331 = vst [vmem:[#allocation6 + $0x68] sm:$0xff] %v310
    %332 = vst [vmem:[#allocation6 + $0x70] sm:$0xff] %v313
    %333 = vst [vmem:[#allocation6 + $0x78] sm:$0xff] %v316
    %v334 = vld [vmem:[%s6] sm:$0x1]
    %v336 = vperm.slane %v334, 0
    %338 = vmatpush.msra.mxu0 %v248
    %339 = vmatpush.msra.mxu0 %v247
    %340 = vmatpush.msra.mxu0 %v246
    %341 = vmatpush.msra.mxu0 %v245
    %342 = vmatpush.msra.mxu0 %v244
    %343 = vmatpush.msra.mxu0 %v243
    %344 = vmatpush.msra.mxu0 %v242
    %345 = vmatpush.msra.mxu0 %v241
    %346 = vmatpush.msra.mxu0 %v240
    %347 = vmatpush.msra.mxu0 %v239
    %348 = vmatpush.msra.mxu0 %v238
    %349 = vmatpush.msra.mxu0 %v237
    %350 = vmatpush.msra.mxu0 %v236
    %351 = vmatpush.msra.mxu0 %v235
    %352 = vmatpush.msra.mxu0 %v234
    %353 = vmatpush.msra.mxu0 %v233
    %354 = vmatmul.f32.gmra.mxu0 %v185
    %v355 = vpop.f32.mrf.mxu0
    %v356 = vadd.f32 %v336, %v355
    %357 = vmatmul.f32.gmra.mxu0 %v186
    %v358 = vpop.f32.mrf.mxu0
    %v359 = vadd.f32 %v336, %v358
    %360 = vmatmul.f32.gmra.mxu0 %v187
    %v361 = vpop.f32.mrf.mxu0
    %v362 = vadd.f32 %v336, %v361
    %363 = vmatmul.f32.gmra.mxu0 %v188
    %v364 = vpop.f32.mrf.mxu0
    %v365 = vadd.f32 %v336, %v364
    %366 = vmatmul.f32.gmra.mxu0 %v189
    %v367 = vpop.f32.mrf.mxu0
    %v368 = vadd.f32 %v336, %v367
    %369 = vmatmul.f32.gmra.mxu0 %v190
    %v370 = vpop.f32.mrf.mxu0
    %v371 = vadd.f32 %v336, %v370
    %372 = vmatmul.f32.gmra.mxu0 %v191
    %v373 = vpop.f32.mrf.mxu0
    %v374 = vadd.f32 %v336, %v373
    %375 = vmatmul.f32.gmra.mxu0 %v192
    %v376 = vpop.f32.mrf.mxu0
    %v377 = vadd.f32 %v336, %v376
    %378 = vmatmul.f32.gmra.mxu0 %v193
    %v379 = vpop.f32.mrf.mxu0
    %v380 = vadd.f32 %v336, %v379
    %381 = vmatmul.f32.gmra.mxu0 %v194
    %v382 = vpop.f32.mrf.mxu0
    %v383 = vadd.f32 %v336, %v382
    %384 = vmatmul.f32.gmra.mxu0 %v195
    %v385 = vpop.f32.mrf.mxu0
    %v386 = vadd.f32 %v336, %v385
    %387 = vmatmul.f32.gmra.mxu0 %v196
    %v388 = vpop.f32.mrf.mxu0
    %v389 = vadd.f32 %v336, %v388
    %390 = vmatmul.f32.gmra.mxu0 %v197
    %v391 = vpop.f32.mrf.mxu0
    %v392 = vadd.f32 %v336, %v391
    %393 = vmatmul.f32.gmra.mxu0 %v198
    %v394 = vpop.f32.mrf.mxu0
    %v395 = vadd.f32 %v336, %v394
    %396 = vmatmul.f32.gmra.mxu0 %v199
    %v397 = vpop.f32.mrf.mxu0
    %v398 = vadd.f32 %v336, %v397
    %399 = vmatmul.f32.gmra.mxu0 %v200
    %v400 = vpop.f32.mrf.mxu0
    %v401 = vadd.f32 %v336, %v400
    %402 = vdwg.mxu0
    %403 = vst [vmem:[#allocation8] sm:$0xff] %v356
    %404 = vst [vmem:[#allocation8 + $0x8] sm:$0xff] %v359
    %405 = vst [vmem:[#allocation8 + $0x10] sm:$0xff] %v362
    %406 = vst [vmem:[#allocation8 + $0x18] sm:$0xff] %v365
    %407 = vst [vmem:[#allocation8 + $0x20] sm:$0xff] %v368
    %408 = vst [vmem:[#allocation8 + $0x28] sm:$0xff] %v371
    %409 = vst [vmem:[#allocation8 + $0x30] sm:$0xff] %v374
    %410 = vst [vmem:[#allocation8 + $0x38] sm:$0xff] %v377
    %411 = vst [vmem:[#allocation8 + $0x40] sm:$0xff] %v380
    %412 = vst [vmem:[#allocation8 + $0x48] sm:$0xff] %v383
    %413 = vst [vmem:[#allocation8 + $0x50] sm:$0xff] %v386
    %414 = vst [vmem:[#allocation8 + $0x58] sm:$0xff] %v389
    %415 = vst [vmem:[#allocation8 + $0x60] sm:$0xff] %v392
    %416 = vst [vmem:[#allocation8 + $0x68] sm:$0xff] %v395
    %417 = vst [vmem:[#allocation8 + $0x70] sm:$0xff] %v398
    %418 = vst [vmem:[#allocation8 + $0x78] sm:$0xff] %v401
    // Predicated region
    $region34: #{tpu_custom_call.1} parent=1 // pred_check
      _
    $region35: #{tpu_custom_call.1} parent=1 // pred_check_branch
      %420 = sbr.rel (0) target = $region37
    $region36: #{tpu_custom_call.1} parent=1 // pred_region
      %422 = vsyncadd [#allocation4], 0
      %s423 = sshll.u32 [#allocation5], 4
      %s424 = int_to_ptr.vmem [resolvable:$true] %s423
      %s425 = sshll.u32 %s7, 4
      %s426 = int_to_ptr.hbm [resolvable:$true] %s425
      %431 = dma.vmem_to_hbm [thread:$0]  %s424, 2048, %s426, [#allocation4], 128, 128, 8
    $region37: #{tpu_custom_call.1} parent=1 // pred_fallthru
      _
    // Predicated region
    $region38: #{tpu_custom_call.1} parent=1 // pred_check
      _
    $region39: #{tpu_custom_call.1} parent=1 // pred_check_branch
      %433 = sbr.rel (0) target = $region41
    $region40: #{tpu_custom_call.1} parent=1 // pred_region
      %435 = vsyncadd [#allocation7], 0
      %s436 = sshll.u32 [#allocation6], 4
      %s437 = int_to_ptr.vmem [resolvable:$true] %s436
      %s438 = sshll.u32 %s8, 4
      %s439 = int_to_ptr.hbm [resolvable:$true] %s438
      %444 = dma.vmem_to_hbm [thread:$0]  %s437, 2048, %s439, [#allocation7], 128, 128, 8
    $region41: #{tpu_custom_call.1} parent=1 // pred_fallthru
      _
    // Predicated region
    $region42: #{tpu_custom_call.1} parent=1 // pred_check
      _
    $region43: #{tpu_custom_call.1} parent=1 // pred_check_branch
      %446 = sbr.rel (0) target = $region45
    $region44: #{tpu_custom_call.1} parent=1 // pred_region
      %448 = vsyncadd [#allocation7], 0
      %s449 = sshll.u32 [#allocation8], 4
      %s450 = int_to_ptr.vmem [resolvable:$true] %s449
      %s451 = sshll.u32 %s9, 4
      %s452 = int_to_ptr.hbm [resolvable:$true] %s451
      %457 = dma.vmem_to_hbm [thread:$0]  %s450, 2048, %s452, [#allocation7], 128, 128, 8
    $region45: #{tpu_custom_call.1} parent=1 // pred_fallthru
      _
    // Predicated region
    $region46: #{tpu_custom_call.1} parent=1 // pred_check
      _
    $region47: #{tpu_custom_call.1} parent=1 // pred_check_branch
      %459 = sbr.rel (0) target = $region49
    $region48: #{tpu_custom_call.1} parent=1 // pred_region
      %461 = dma.done [#allocation4], 2048
    $region49: #{tpu_custom_call.1} parent=1 // pred_fallthru
      _
    // Predicated region
    $region50: #{tpu_custom_call.1} parent=1 // pred_check
      _
    $region51: #{tpu_custom_call.1} parent=1 // pred_check_branch
      %463 = sbr.rel (0) target = $region53
    $region52: #{tpu_custom_call.1} parent=1 // pred_region
      %465 = dma.done [#allocation7], 2048
    $region53: #{tpu_custom_call.1} parent=1 // pred_fallthru
      _
    // Predicated region
    $region54: #{tpu_custom_call.1} parent=1 // pred_check
      _
    $region55: #{tpu_custom_call.1} parent=1 // pred_check_branch
      %467 = sbr.rel (0) target = $region57
    $region56: #{tpu_custom_call.1} parent=1 // pred_region
      %469 = dma.done [#allocation7], 2048
    $region57: #{tpu_custom_call.1} parent=1 // pred_fallthru
      _
    %470 = vsyncpa [#allocation3], 1
    %471 = vsyncpa [#allocation4], 1
    %472 = vsyncpa [#allocation7], 1

</llo_original>
